<compile_context>
chip_gen: v5e
topology: v5e:2x2
jax: 0.10.0
libtpu: 0.0.40
codegen_flags: <defaults>
</compile_context>

<pallas_src>
import math
from functools import partial

import jax
import jax.numpy as jnp
from jax.experimental import pallas as pl
from jax.experimental.pallas import tpu as pltpu

LANE = 128  # TPU vreg lane width

# Weight-slab budgets (bytes of bf16 weights in VMEM).
_RESIDENT_W_BYTES = 24 << 20   # keep slab resident + single-buffered up to this
_STREAM_W_TILE_BYTES = 8 << 20  # per double-buffered K-tile budget when streaming


def _round_up(v, m):
    return (v + m - 1) // m * m


def _spec(block_shape, index_map, *, buffers=None):
    """BlockSpec, optionally single/multi-buffered (graceful fallback)."""
    if buffers is not None:
        try:
            return pl.BlockSpec(block_shape, index_map,
                                pipeline_mode=pl.Buffered(buffers))
        except (TypeError, AttributeError):
            pass
    return pl.BlockSpec(block_shape, index_map)


def _choose_k_tile(k_pad, n_tot, k_align=LANE):
    """Pick the K tile: full K (resident, single-buffered weights) when it fits,
    otherwise the largest aligned divisor of K_pad whose double-buffered tile
    fits the streaming budget."""
    if k_pad * n_tot * 2 <= _RESIDENT_W_BYTES:
        return k_pad, True
    best = k_align
    tk = k_align
    while tk <= k_pad:
        if k_pad % tk == 0 and 2 * tk * n_tot * 2 <= _STREAM_W_TILE_BYTES:
            best = tk
        tk += k_align
    return best, False


def _vmem_limit_bytes(tm, tk, n_tot, out_pad, x_itemsize, w_resident, k_pad):
    w_bytes = (k_pad * n_tot * 2) if w_resident else (2 * tk * n_tot * 2)
    need = (2 * tm * tk * x_itemsize     # x tile (double-buffered)
            + w_bytes                    # weight slab / streamed K tiles
            + n_tot * 4                  # bias
            + 2 * tm * out_pad * 4       # output tile (double-buffered)
            + tm * n_tot * 4)            # f32 accumulator scratch
    need = int(need * 1.3) + (2 << 20)   # headroom for compiler scratch
    try:
        cap = int(pltpu.get_tpu_info().vmem_capacity_bytes)
    except Exception:
        cap = 64 << 20                   # conservative: v7x per-core VMEM
    return int(max(32 << 20, min(need, (cap * 3) // 4)))


def pack_maxout_params(w, b, *, out_dim, num_pieces, k_align=LANE, n_align=LANE):
    """One-time packing of the PyTorch nn.Linear parameters (cache the result).

      w : (out_dim * num_pieces, in_dim) f32   (PyTorch layout: pieces interleaved)
      b : (out_dim * num_pieces,)        f32

    Returns
      w_packed : (K_pad, num_pieces * OUT_pad) bf16,
                 w_packed[k, p*OUT_pad + o] = w[o*num_pieces + p, k]
      b_packed : (1, num_pieces * OUT_pad) f32, same column layout.
    """
    total_out, in_dim = w.shape
    assert total_out == out_dim * num_pieces
    k_pad = _round_up(in_dim, k_align)
    out_pad = _round_up(out_dim, n_align)

    w3 = w.reshape(out_dim, num_pieces, in_dim)        # [o, p, k]
    w3 = jnp.transpose(w3, (2, 1, 0))                  # [k, p, o]
    w3 = jnp.pad(w3, ((0, k_pad - in_dim), (0, 0), (0, out_pad - out_dim)))
    w_packed = w3.reshape(k_pad, num_pieces * out_pad).astype(jnp.bfloat16)

    b2 = b.reshape(out_dim, num_pieces).T              # [p, o]
    b2 = jnp.pad(b2, ((0, 0), (0, out_pad - out_dim)))
    b_packed = b2.reshape(1, num_pieces * out_pad).astype(jnp.float32)
    return w_packed, b_packed


def maxout_kernel(num_pieces, out_tile, x_ref, w_ref, b_ref, out_ref, acc_ref):
    """One (row-block, K-block) step.

    x_ref  : (TM, TK)               input dtype (cast to bf16 here)
    w_ref  : (TK, P*OUT_pad)        bf16 piece-concatenated weight slab
    b_ref  : (1, P*OUT_pad)         f32
    out_ref: (TM, OUT_pad)          f32
    acc_ref: (TM, P*OUT_pad)        f32 scratch accumulator
    """
    k = pl.program_id(1)

    @pl.when(k == 0)
    def _():
        acc_ref[...] = jnp.zeros_like(acc_ref)

    x = x_ref[...].astype(jnp.bfloat16)
    acc_ref[...] += jnp.dot(x, w_ref[...], preferred_element_type=jnp.float32)

    @pl.when(k == pl.num_programs(1) - 1)
    def _():
        z = acc_ref[...] + b_ref[...]
        m = z[:, :out_tile]                              # lane-aligned slices
        for p in range(1, num_pieces):                   # tiny static unroll
            m = jnp.maximum(m, z[:, p * out_tile:(p + 1) * out_tile])
        out_ref[...] = m.astype(out_ref.dtype)


@partial(jax.jit, static_argnames=("out_dim", "num_pieces", "row_block"))
def maxout_forward(x, w_packed, b_packed, *, out_dim, num_pieces, row_block=512):
    """MaxOut forward with pre-packed parameters.

    x returns shape (prod(leading dims), out_dim) f32 -- matches the PyTorch
    module's view(-1, out_dim, num_pieces).max(dim=2).
    """
    in_dim = x.shape[-1]
    M = math.prod(x.shape[:-1])
    k_pad, n_tot = w_packed.shape
    assert n_tot % num_pieces == 0
    out_pad = n_tot // num_pieces
    assert out_dim <= out_pad and in_dim <= k_pad

    tm = min(row_block, _round_up(max(M, 1), 8))
    m_pad = _round_up(max(M, 1), tm)
    tk, w_resident = _choose_k_tile(k_pad, n_tot)
    k_blocks = k_pad // tk

    x2 = x.reshape(M, in_dim)
    if m_pad != M or k_pad != in_dim:
        x2 = jnp.pad(x2, ((0, m_pad - M), (0, k_pad - in_dim)))

    # TODO(synk): for extremely large out_dim, add an N grid axis (per-N-tile
    # piece interleaving) so the weight lane width is also bounded.
    in_specs = [
        pl.BlockSpec((tm, tk), lambda i, k: (i, k)),
        _spec((tk, n_tot), lambda i, k: (k, 0),
              buffers=1 if w_resident else None),        # resident slab: 1 buffer
        _spec((1, n_tot), lambda i, k: (0, 0), buffers=1),
    ]

    out = pl.pallas_call(
        partial(maxout_kernel, num_pieces, out_pad),
        out_shape=jax.ShapeDtypeStruct((m_pad, out_pad), jnp.float32),
        grid_spec=pltpu.PrefetchScalarGridSpec(
            num_scalar_prefetch=0,
            grid=(m_pad // tm, k_blocks),
            in_specs=in_specs,
            out_specs=pl.BlockSpec((tm, out_pad), lambda i, k: (i, 0)),
            scratch_shapes=[pltpu.VMEM((tm, n_tot), jnp.float32)],
        ),
        compiler_params=pltpu.CompilerParams(
            dimension_semantics=("parallel", "arbitrary"),
            vmem_limit_bytes=_vmem_limit_bytes(
                tm, tk, n_tot, out_pad, x2.dtype.itemsize, w_resident, k_pad),
        ),
    )(x2, w_packed, b_packed)

    return out[:M, :out_dim]


def maxout_reference(x, w, b, *, out_dim, num_pieces):
    """Pure-JAX reference with exact PyTorch MaxOut semantics (f32)."""
    in_dim = x.shape[-1]
    y = x.reshape(-1, in_dim) @ w.T + b
    y = y.reshape(-1, out_dim, num_pieces)
    return y.max(axis=2)


if __name__ == "__main__":
    key = jax.random.PRNGKey(0)
    kx, kw, kb = jax.random.split(key, 3)

    B, S = 2, 16            # leading dims (flattened by the view(-1, ...))
    IN_DIM = 48
    OUT_DIM = 24
    NUM_PIECES = 2

    x = jax.random.normal(kx, (B, S, IN_DIM), jnp.float32)
    bound = 1.0 / math.sqrt(IN_DIM)
    w = jax.random.uniform(kw, (OUT_DIM * NUM_PIECES, IN_DIM), jnp.float32, -bound, bound)
    b = jax.random.uniform(kb, (OUT_DIM * NUM_PIECES,), jnp.float32, -bound, bound)

    # One-time parameter packing (piece-major, padded, bf16) -- cached across calls.
    w_packed, b_packed = pack_maxout_params(w, b, out_dim=OUT_DIM, num_pieces=NUM_PIECES)

    out = maxout_forward(x, w_packed, b_packed, out_dim=OUT_DIM, num_pieces=NUM_PIECES)
    out = jax.block_until_ready(out)

    ref = maxout_reference(x, w, b, out_dim=OUT_DIM, num_pieces=NUM_PIECES)
    assert out.shape == (B * S, OUT_DIM)
    # bf16 MXU operands (f32 accumulation) -> slightly looser tolerance vs f32 ref.
    assert jnp.allclose(out, ref, rtol=3e-2, atol=3e-2), "mismatch vs pure-JAX reference"

    print("KERNEL_OK")
</pallas_src>

<mosaic_0001>
module attributes {stable_mosaic.version = 11 : i64} {
  func.func @maxout_kernel(%arg0: i32, %arg1: i32, %arg2: memref<32x128xf32, #tpu.memory_space<vmem>>, %arg3: memref<128x256xbf16, #tpu.memory_space<vmem>>, %arg4: memref<1x256xf32, #tpu.memory_space<vmem>>, %arg5: memref<32x128xf32, #tpu.memory_space<vmem>>, %arg6: memref<32x256xf32, #tpu.memory_space<vmem>>) attributes {dimension_semantics = [#tpu.dimension_semantics<parallel>, #tpu.dimension_semantics<arbitrary>], iteration_bounds = array<i64: 1, 1>, scalar_prefetch = 0 : i64, scratch_operands = 1 : i64, tpu.core_type = #tpu.core_type<tc>, window_params = [{transform_indices = @transform_0, window_bounds = array<i64: 32, 128>}, {pipeline_mode = #tpu.pipeline_mode<synchronous>, transform_indices = @transform_1, window_bounds = array<i64: 128, 256>}, {pipeline_mode = #tpu.pipeline_mode<synchronous>, transform_indices = @transform_2, window_bounds = array<i64: 1, 256>}, {transform_indices = @transform_3, window_bounds = array<i64: 32, 128>}]} {
    %c0_i32 = arith.constant 0 : i32
    %0 = arith.cmpi eq, %arg1, %c0_i32 : i32
    %1 = arith.extui %0 : i1 to i32
    %c0_i32_0 = arith.constant 0 : i32
    %2 = arith.cmpi ne, %1, %c0_i32_0 : i32
    scf.if %2 {
      %cst_10 = arith.constant 0.000000e+00 : f32
      %13 = vector.broadcast %cst_10 : f32 to vector<32x256xf32>
      %c0_11 = arith.constant 0 : index
      %c0_12 = arith.constant 0 : index
      %14 = vector.load %arg6[%c0_11, %c0_12] : memref<32x256xf32, #tpu.memory_space<vmem>>, vector<32x256xf32>
      tpu.vector_store %arg6[%c0_11, %c0_12], %13 {strides = array<i32>} : memref<32x256xf32, #tpu.memory_space<vmem>>, vector<32x256xf32>,
    } else {
    }
    %c0 = arith.constant 0 : index
    %c0_1 = arith.constant 0 : index
    %3 = vector.load %arg2[%c0, %c0_1] : memref<32x128xf32, #tpu.memory_space<vmem>>, vector<32x128xf32>
    %4 = arith.truncf %3 : vector<32x128xf32> to vector<32x128xbf16>
    %c0_2 = arith.constant 0 : index
    %c0_3 = arith.constant 0 : index
    %5 = vector.load %arg6[%c0_2, %c0_3] : memref<32x256xf32, #tpu.memory_space<vmem>>, vector<32x256xf32>
    %c0_4 = arith.constant 0 : index
    %c0_5 = arith.constant 0 : index
    %6 = vector.load %arg3[%c0_4, %c0_5] : memref<128x256xbf16, #tpu.memory_space<vmem>>, vector<128x256xbf16>
    %cst = arith.constant dense<0.000000e+00> : vector<32x256xf32>
    %7 = tpu.matmul %4, %6, %cst {dimension_numbers = #tpu.dot_dimension_numbers<[1], [0], [0], [1], [0, 0, 1, 1], [], []>} : vector<32x128xbf16>, vector<128x256xbf16>, vector<32x256xf32> -> vector<32x256xf32>
    %8 = arith.addf %5, %7 : vector<32x256xf32>
    %c0_6 = arith.constant 0 : index
    %c0_7 = arith.constant 0 : index
    %9 = vector.load %arg6[%c0_6, %c0_7] : memref<32x256xf32, #tpu.memory_space<vmem>>, vector<32x256xf32>
    tpu.vector_store %arg6[%c0_6, %c0_7], %8 {strides = array<i32>} : memref<32x256xf32, #tpu.memory_space<vmem>>, vector<32x256xf32>,
    %c0_i32_8 = arith.constant 0 : i32
    %10 = arith.cmpi eq, %arg1, %c0_i32_8 : i32
    %11 = arith.extui %10 : i1 to i32
    %c0_i32_9 = arith.constant 0 : i32
    %12 = arith.cmpi ne, %11, %c0_i32_9 : i32
    scf.if %12 {
      %c0_10 = arith.constant 0 : index
      %c0_11 = arith.constant 0 : index
      %13 = vector.load %arg6[%c0_10, %c0_11] : memref<32x256xf32, #tpu.memory_space<vmem>>, vector<32x256xf32>
      %c0_12 = arith.constant 0 : index
      %c0_13 = arith.constant 0 : index
      %14 = vector.load %arg4[%c0_12, %c0_13] : memref<1x256xf32, #tpu.memory_space<vmem>>, vector<1x256xf32>
      %15 = vector.broadcast %14 : vector<1x256xf32> to vector<32x256xf32>
      %16 = arith.addf %13, %15 : vector<32x256xf32>
      %17 = vector.extract_strided_slice %16 {offsets = [0, 0], sizes = [32, 128], strides = [1, 1]} : vector<32x256xf32> to vector<32x128xf32>
      %18 = vector.extract_strided_slice %16 {offsets = [0, 128], sizes = [32, 128], strides = [1, 1]} : vector<32x256xf32> to vector<32x128xf32>
      %19 = arith.maximumf %17, %18 : vector<32x128xf32>
      %c0_14 = arith.constant 0 : index
      %c0_15 = arith.constant 0 : index
      %20 = vector.load %arg5[%c0_14, %c0_15] : memref<32x128xf32, #tpu.memory_space<vmem>>, vector<32x128xf32>
      tpu.vector_store %arg5[%c0_14, %c0_15], %19 {strides = array<i32>} : memref<32x128xf32, #tpu.memory_space<vmem>>, vector<32x128xf32>,
    } else {
    }
    return
  }
  func.func @transform_0(%arg0: i32, %arg1: i32) -> (i32, i32) {
    %c0_i32 = arith.constant 0 : i32
    return %arg0, %arg1 : i32, i32
  }
  func.func @transform_1(%arg0: i32, %arg1: i32) -> (i32, i32) {
    %c0_i32 = arith.constant 0 : i32
    %c0_i32_0 = arith.constant 0 : i32
    return %arg1, %c0_i32 : i32, i32
  }
  func.func @transform_2(%arg0: i32, %arg1: i32) -> (i32, i32) {
    %c0_i32 = arith.constant 0 : i32
    %c0_i32_0 = arith.constant 0 : i32
    %c0_i32_1 = arith.constant 0 : i32
    return %c0_i32, %c0_i32_0 : i32, i32
  }
  func.func @transform_3(%arg0: i32, %arg1: i32) -> (i32, i32) {
    %c0_i32 = arith.constant 0 : i32
    %c0_i32_0 = arith.constant 0 : i32
    return %arg0, %c0_i32 : i32, i32
  }
}

</mosaic_0001>

<llo_original>
// kernel: maxout_forward.1
$region0: #{maxout_forward.1}
  #allocation0 [shape = 'u32[]', space=smem, size = 0x4, offset = 0x4, fixed_abs, tag = 'smem constant byte address 0x4 - core index']
  #allocation1 [shape = 'u32[72,128]{1,0:T(1,128)}', space=vmem, size = 0x9000, scoped, tag = 'internal scratch']
  #allocation2 [shape = 'f32[32,256]{1,0:T(8,128)}', space=vmem, size = 0x8000, scoped, tag = 'scratch operand']
  %s0 = inlined_call_operand.vmem [shape: f32[32,128], index: 0, kind: input, shape index: {}]
  %s1 = inlined_call_operand.hbm [shape: bf16[128,256], index: 1, kind: input, shape index: {}]
  %s2 = inlined_call_operand.vmem [shape: f32[1,256], index: 2, kind: input, shape index: {}]
  %s3 = inlined_call_operand.vmem [shape: f32[32,128], index: 3, kind: output, shape index: {}]
  %s4 = sld [smem:[#allocation0]]
  $region34: #{maxout_forward.1} parent=0
    _
  %s6 = ssub.s32 1, %s4
  %s7 = scalar_select 0, %s6, %s4
  $region1: #{maxout_forward.1} parent=0
    #allocation3 [shape = 'u8[65536]{0}', space=vmem, size = 0x10000, scoped, tag = 'input window, operand 1, single buffered']
    #allocation4 [shape = 's32[1]{0}', space=sflag, size = 0x4, scoped, tag = 'scoped memory for maxout_forward.1']
    %8 = vsyncpa [#allocation4], 0
    // Predicated region
    $region2: #{maxout_forward.1} parent=1 // pred_check
      _
    $region3: #{maxout_forward.1} parent=1 // pred_check_branch
      %10 = sbr.rel (0) target = $region5
    $region4: #{maxout_forward.1} parent=1 // pred_region
      _
    $region5: #{maxout_forward.1} parent=1 // pred_fallthru
      _
    // Predicated region
    $region6: #{maxout_forward.1} parent=1 // pred_check
      _
    $region7: #{maxout_forward.1} parent=1 // pred_check_branch
      %12 = sbr.rel (0) target = $region9
    $region8: #{maxout_forward.1} parent=1 // pred_region
      %14 = vsyncadd [#allocation4], 0
      %s15 = sshll.u32 %s1, 4
      %s16 = int_to_ptr.hbm [resolvable:$true] %s15
      %s17 = sshll.u32 [#allocation3], 4
      %s18 = int_to_ptr.vmem [resolvable:$true] %s17
      %23 = dma.hbm_to_vmem [thread:$0]  %s16, 2048, %s18, [#allocation4], 128, 128, 8
    $region9: #{maxout_forward.1} parent=1 // pred_fallthru
      _
    // Predicated region
    $region10: #{maxout_forward.1} parent=1 // pred_check
      _
    $region11: #{maxout_forward.1} parent=1 // pred_check_branch
      %25 = sbr.rel (0) target = $region13
    $region12: #{maxout_forward.1} parent=1 // pred_region
      _
    $region13: #{maxout_forward.1} parent=1 // pred_fallthru
      _
    // Predicated region
    $region14: #{maxout_forward.1} parent=1 // pred_check
      _
    $region15: #{maxout_forward.1} parent=1 // pred_check_branch
      %27 = sbr.rel (0) target = $region17
    $region16: #{maxout_forward.1} parent=1 // pred_region
      %29 = dma.done [#allocation4], 2048
    $region17: #{maxout_forward.1} parent=1 // pred_fallthru
      _
    %p30 = scmp.eq.s32.totalorder 0, 0
    // Predicated region
    $region18: #{maxout_forward.1} parent=1 // pred_check
      %p31 = pneg %p30
    $region19: #{maxout_forward.1} parent=1 // pred_check_branch
      %33 = sbr.rel (%p31) target = $region21
    $region20: #{maxout_forward.1} parent=1 // pred_region
      %34 = vst [vmem:[#allocation2] sm:$0xff] 0.0
      %35 = vst [vmem:[#allocation2 + $0x8] sm:$0xff] 0.0
      %36 = vst [vmem:[#allocation2 + $0x10] sm:$0xff] 0.0
      %37 = vst [vmem:[#allocation2 + $0x18] sm:$0xff] 0.0
      %38 = vst [vmem:[#allocation2 + $0x20] sm:$0xff] 0.0
      %39 = vst [vmem:[#allocation2 + $0x28] sm:$0xff] 0.0
      %40 = vst [vmem:[#allocation2 + $0x30] sm:$0xff] 0.0
      %41 = vst [vmem:[#allocation2 + $0x38] sm:$0xff] 0.0
    $region21: #{maxout_forward.1} parent=1 // pred_fallthru
      _
    %v42 = vld [vmem:[%s0] sm:$0xff]
    %v43 = vld [vmem:[%s0 + $0x8] sm:$0xff]
    %v44 = vld [vmem:[%s0 + $0x10] sm:$0xff]
    %v45 = vld [vmem:[%s0 + $0x18] sm:$0xff]
    %v46 = vpack.c.bf16 %v43, %v42
    %v47 = vpack.c.bf16 %v45, %v44
    %v48 = vld [vmem:[#allocation2] sm:$0xff]
    %v49 = vld [vmem:[#allocation2 + $0x8] sm:$0xff]
    %v50 = vld [vmem:[#allocation2 + $0x10] sm:$0xff]
    %v51 = vld [vmem:[#allocation2 + $0x18] sm:$0xff]
    %v52 = vld [vmem:[#allocation2 + $0x20] sm:$0xff]
    %v53 = vld [vmem:[#allocation2 + $0x28] sm:$0xff]
    %v54 = vld [vmem:[#allocation2 + $0x30] sm:$0xff]
    %v55 = vld [vmem:[#allocation2 + $0x38] sm:$0xff]
    %v56 = vld [vmem:[#allocation3] sm:$0xff]
    %v57 = vld [vmem:[#allocation3 + $0x8] sm:$0xff]
    %v58 = vld [vmem:[#allocation3 + $0x10] sm:$0xff]
    %v59 = vld [vmem:[#allocation3 + $0x18] sm:$0xff]
    %v60 = vld [vmem:[#allocation3 + $0x20] sm:$0xff]
    %v61 = vld [vmem:[#allocation3 + $0x28] sm:$0xff]
    %v62 = vld [vmem:[#allocation3 + $0x30] sm:$0xff]
    %v63 = vld [vmem:[#allocation3 + $0x38] sm:$0xff]
    %v64 = vld [vmem:[#allocation3 + $0x40] sm:$0xff]
    %v65 = vld [vmem:[#allocation3 + $0x48] sm:$0xff]
    %v66 = vld [vmem:[#allocation3 + $0x50] sm:$0xff]
    %v67 = vld [vmem:[#allocation3 + $0x58] sm:$0xff]
    %v68 = vld [vmem:[#allocation3 + $0x60] sm:$0xff]
    %v69 = vld [vmem:[#allocation3 + $0x68] sm:$0xff]
    %v70 = vld [vmem:[#allocation3 + $0x70] sm:$0xff]
    %v71 = vld [vmem:[#allocation3 + $0x78] sm:$0xff]
    %v88 = vunpack.c.l.b16 %v56
    %v89 = vunpack.c.h.b16 %v56
    %v90 = vunpack.c.l.b16 %v57
    %v91 = vunpack.c.h.b16 %v57
    %v92 = vunpack.c.l.b16 %v58
    %v93 = vunpack.c.h.b16 %v58
    %v94 = vunpack.c.l.b16 %v59
    %v95 = vunpack.c.h.b16 %v59
    %v96 = vunpack.c.l.b16 %v60
    %v97 = vunpack.c.h.b16 %v60
    %v98 = vunpack.c.l.b16 %v61
    %v99 = vunpack.c.h.b16 %v61
    %v100 = vunpack.c.l.b16 %v62
    %v101 = vunpack.c.h.b16 %v62
    %v102 = vunpack.c.l.b16 %v63
    %v103 = vunpack.c.h.b16 %v63
    %v104 = vunpack.c.l.b16 %v64
    %v105 = vunpack.c.h.b16 %v64
    %v106 = vunpack.c.l.b16 %v65
    %v107 = vunpack.c.h.b16 %v65
    %v108 = vunpack.c.l.b16 %v66
    %v109 = vunpack.c.h.b16 %v66
    %v110 = vunpack.c.l.b16 %v67
    %v111 = vunpack.c.h.b16 %v67
    %v112 = vunpack.c.l.b16 %v68
    %v113 = vunpack.c.h.b16 %v68
    %v114 = vunpack.c.l.b16 %v69
    %v115 = vunpack.c.h.b16 %v69
    %v116 = vunpack.c.l.b16 %v70
    %v117 = vunpack.c.h.b16 %v70
    %v118 = vunpack.c.l.b16 %v71
    %v119 = vunpack.c.h.b16 %v71
    %v120 = vpack.c.b16 %v90, %v88
    %v121 = vpack.c.b16 %v91, %v89
    %v122 = vpack.c.b16 %v94, %v92
    %v123 = vpack.c.b16 %v95, %v93
    %v124 = vpack.c.b16 %v98, %v96
    %v125 = vpack.c.b16 %v99, %v97
    %v126 = vpack.c.b16 %v102, %v100
    %v127 = vpack.c.b16 %v103, %v101
    %v128 = vpack.c.b16 %v106, %v104
    %v129 = vpack.c.b16 %v107, %v105
    %v130 = vpack.c.b16 %v110, %v108
    %v131 = vpack.c.b16 %v111, %v109
    %v132 = vpack.c.b16 %v114, %v112
    %v133 = vpack.c.b16 %v115, %v113
    %v134 = vpack.c.b16 %v118, %v116
    %v135 = vpack.c.b16 %v119, %v117
    %152 = vmatpush.bf16.msra.mxu0 %v134
    %153 = vmatpush.bf16.msra.mxu0 %v132
    %154 = vmatpush.bf16.msra.mxu0 %v130
    %155 = vmatpush.bf16.msra.mxu0 %v128
    %156 = vmatpush.bf16.msra.mxu0 %v126
    %157 = vmatpush.bf16.msra.mxu0 %v124
    %158 = vmatpush.bf16.msra.mxu0 %v122
    %159 = vmatpush.bf16.msra.mxu0 %v120
    %160 = vmatmul.bf16.gmra.mxu0 %v46
    %v161 = vpop.f32.mrf.mxu0
    %v162 = vadd.f32 0.0, %v161
    %v163 = vpop.f32.mrf.mxu0
    %v164 = vadd.f32 0.0, %v163
    %165 = vmatmul.bf16.gmra.mxu0 %v47
    %v166 = vpop.f32.mrf.mxu0
    %v167 = vadd.f32 0.0, %v166
    %v168 = vpop.f32.mrf.mxu0
    %v169 = vadd.f32 0.0, %v168
    %170 = vdwg.mxu0
    %171 = vmatpush.bf16.msra.mxu0 %v135
    %172 = vmatpush.bf16.msra.mxu0 %v133
    %173 = vmatpush.bf16.msra.mxu0 %v131
    %174 = vmatpush.bf16.msra.mxu0 %v129
    %175 = vmatpush.bf16.msra.mxu0 %v127
    %176 = vmatpush.bf16.msra.mxu0 %v125
    %177 = vmatpush.bf16.msra.mxu0 %v123
    %178 = vmatpush.bf16.msra.mxu0 %v121
    %179 = vmatmul.bf16.gmra.mxu0 %v46
    %v180 = vpop.f32.mrf.mxu0
    %v181 = vadd.f32 0.0, %v180
    %v182 = vpop.f32.mrf.mxu0
    %v183 = vadd.f32 0.0, %v182
    %184 = vmatmul.bf16.gmra.mxu0 %v47
    %v185 = vpop.f32.mrf.mxu0
    %v186 = vadd.f32 0.0, %v185
    %v187 = vpop.f32.mrf.mxu0
    %v188 = vadd.f32 0.0, %v187
    %189 = vdwg.mxu0
    %v190 = vadd.f32 %v48, %v162
    %v191 = vadd.f32 %v49, %v181
    %v192 = vadd.f32 %v50, %v164
    %v193 = vadd.f32 %v51, %v183
    %v194 = vadd.f32 %v52, %v167
    %v195 = vadd.f32 %v53, %v186
    %v196 = vadd.f32 %v54, %v169
    %v197 = vadd.f32 %v55, %v188
    %198 = vst [vmem:[#allocation2] sm:$0xff] %v190
    %199 = vst [vmem:[#allocation2 + $0x8] sm:$0xff] %v191
    %200 = vst [vmem:[#allocation2 + $0x10] sm:$0xff] %v192
    %201 = vst [vmem:[#allocation2 + $0x18] sm:$0xff] %v193
    %202 = vst [vmem:[#allocation2 + $0x20] sm:$0xff] %v194
    %203 = vst [vmem:[#allocation2 + $0x28] sm:$0xff] %v195
    %204 = vst [vmem:[#allocation2 + $0x30] sm:$0xff] %v196
    %205 = vst [vmem:[#allocation2 + $0x38] sm:$0xff] %v197
    // Predicated region
    $region22: #{maxout_forward.1} parent=1 // pred_check
      %p206 = pneg %p30
    $region23: #{maxout_forward.1} parent=1 // pred_check_branch
      %208 = sbr.rel (%p206) target = $region25
    $region24: #{maxout_forward.1} parent=1 // pred_region
      %v209 = vld [vmem:[#allocation2] sm:$0xff]
      %v210 = vld [vmem:[#allocation2 + $0x8] sm:$0xff]
      %v211 = vld [vmem:[#allocation2 + $0x10] sm:$0xff]
      %v212 = vld [vmem:[#allocation2 + $0x18] sm:$0xff]
      %v213 = vld [vmem:[#allocation2 + $0x20] sm:$0xff]
      %v214 = vld [vmem:[#allocation2 + $0x28] sm:$0xff]
      %v215 = vld [vmem:[#allocation2 + $0x30] sm:$0xff]
      %v216 = vld [vmem:[#allocation2 + $0x38] sm:$0xff]
      %v217 = vld [vmem:[%s2] sm:$0x3]
      %v219 = vperm.slane %v217, 0
      %v220 = vperm.slane %v217, 1
      %v223 = vadd.f32 %v209, %v219
      %v224 = vadd.f32 %v210, %v220
      %v225 = vadd.f32 %v211, %v219
      %v226 = vadd.f32 %v212, %v220
      %v227 = vadd.f32 %v213, %v219
      %v228 = vadd.f32 %v214, %v220
      %v229 = vadd.f32 %v215, %v219
      %v230 = vadd.f32 %v216, %v220
      %v231 = vmax.f32 %v223, %v224
      %v232 = vmax.f32 %v225, %v226
      %v233 = vmax.f32 %v227, %v228
      %v234 = vmax.f32 %v229, %v230
      %235 = vst [vmem:[%s3] sm:$0xff] %v231
      %236 = vst [vmem:[%s3 + $0x8] sm:$0xff] %v232
      %237 = vst [vmem:[%s3 + $0x10] sm:$0xff] %v233
      %238 = vst [vmem:[%s3 + $0x18] sm:$0xff] %v234
    $region25: #{maxout_forward.1} parent=1 // pred_fallthru
      _
    // Predicated region
    $region26: #{maxout_forward.1} parent=1 // pred_check
      _
    $region27: #{maxout_forward.1} parent=1 // pred_check_branch
      %240 = sbr.rel (0) target = $region29
    $region28: #{maxout_forward.1} parent=1 // pred_region
      _
    $region29: #{maxout_forward.1} parent=1 // pred_fallthru
      _
    // Predicated region
    $region30: #{maxout_forward.1} parent=1 // pred_check
      _
    $region31: #{maxout_forward.1} parent=1 // pred_check_branch
      %242 = sbr.rel (0) target = $region33
    $region32: #{maxout_forward.1} parent=1 // pred_region
      _
    $region33: #{maxout_forward.1} parent=1 // pred_fallthru
      _
    %243 = vsyncpa [#allocation4], 1

</llo_original>
